<compile_context>
chip_gen: v6e
topology: v6e:2x2x1
jax: 0.10.0
libtpu: 0.0.40
codegen_flags: <defaults>
</compile_context>

<pallas_src>
import functools

import jax
import jax.numpy as jnp
from jax import lax
from jax.experimental import pallas as pl
from jax.experimental.pallas import tpu as pltpu

_MIB = 1024 * 1024


def _vmem_capacity_bytes() -> int:
    """Per-core VMEM capacity; conservative 64 MiB (v7x) if the query fails."""
    try:
        cap = int(pltpu.get_tpu_info().vmem_capacity_bytes)
        if cap > 0:
            return cap
    except Exception:
        pass
    return 64 * _MIB


def _attn_vmem_bytes(tq, tp, ck, co, itemsize):
    """Conservative per-step VMEM footprint of the attention kernel."""
    # Double-buffered input/output blocks (Q tile, K slab, V slab, output tile).
    blocks = 2 * itemsize * (ck * tq + ck * tp + co * tp + co * tq)
    # f32 score/probability intermediates (s, p, slack) + bf16 copy of p for the MXU.
    inter = 12 * tq * tp + 2 * tq * tp
    # Small (Co, TQ)-sized temporaries.
    small = 16 * 4 * (co + 8) * max(tq, 128)
    return blocks + inter + small


def _pick_query_tile(t_pad, ck, co, itemsize, budget):
    """Largest query tile (multiple of 128 dividing t_pad) whose footprint fits budget."""
    if t_pad <= 512 or t_pad % 128 != 0:
        return t_pad
    best = 128
    for tq in range(128, t_pad + 1, 128):
        if t_pad % tq == 0 and _attn_vmem_bytes(tq, t_pad, ck, co, itemsize) <= budget:
            best = tq
    return best


def _qkv_proj_kernel(ck, x_ref, w_ref, q_ref, k_ref, v_ref):
    # x_ref: (Cin, TT)   w_ref: (2*Ck+Co, Cin) = [Wq; Wk; Wv]
    x = x_ref[...]
    qkv = lax.dot_general(w_ref[...], x, (((1,), (0,)), ((), ())),
                          preferred_element_type=jnp.float32)        # (2Ck+Co, TT)
    q_ref[...] = qkv[0:ck, :].astype(q_ref.dtype)
    k_ref[...] = qkv[ck:2 * ck, :].astype(k_ref.dtype)
    v_ref[...] = qkv[2 * ck:, :].astype(v_ref.dtype)


def _attention_kernel(t_valid, fast_matmul, q_ref, k_ref, v_ref, o_ref):
    # q_ref: (Ck, TQ)   k_ref: (Ck, Tp)   v_ref: (Co, Tp)   o_ref: (Co, TQ)
    tp = k_ref.shape[-1]
    q = q_ref[...]
    k = k_ref[...]
    v = v_ref[...]

    # bf16 operands (f32 accumulation) for the two dominant matmuls when input is f32.
    mm_dt = jnp.bfloat16 if (fast_matmul and q.dtype == jnp.float32) else q.dtype

    # scores[t, s] = sum_c Q[c, t] * K[c, s]  -> (TQ, Tp); no materialized transpose.
    s = lax.dot_general(q.astype(mm_dt), k.astype(mm_dt),
                        (((0,), (0,)), ((), ())),
                        preferred_element_type=jnp.float32)

    if t_valid < tp:  # static: mask zero-padded key columns (ragged T support)
        key_idx = lax.broadcasted_iota(jnp.int32, s.shape, 1)
        s = jnp.where(key_idx < t_valid, s, jnp.float32(-1e30))

    # Row softmax over the key axis, kept in f32; normalization is deferred.
    s = s - jnp.max(s, axis=-1, keepdims=True)
    p = jnp.exp(s)                                  # unnormalized probabilities (TQ, Tp)
    p_mm = p.astype(mm_dt)

    # out_un[o, t] = sum_s V[o, s] * p[t, s]  -> (Co, TQ); contraction over Tp (large).
    out_un = lax.dot_general(v.astype(mm_dt), p_mm, (((1,), (1,)), ((), ())),
                             preferred_element_type=jnp.float32)

    # Row sums of p produced directly in (*, TQ) lane orientation by a tiny,
    # fill-dominated MXU matmul (8 identical rows keep M aligned) -- no transposes.
    ones_blk = jnp.ones((8, tp), mm_dt)
    denom = lax.dot_general(ones_blk, p_mm, (((1,), (1,)), ((), ())),
                            preferred_element_type=jnp.float32)[0:1, :]   # (1, TQ)

    r = pl.reciprocal(denom, approx=True)           # EUP slot (otherwise idle)
    r = r * (2.0 - denom * r)                       # one Newton step -> ~f32 accuracy
    o_ref[...] = (out_un * r).astype(o_ref.dtype)   # lane-dense (Co, TQ) store


def attention_layer(x_nct, wq, wk, wv, *, fast_matmul=True):
    """x_nct: (B, Cin, T) NCT layout.  wq/wk: (Ck, Cin), wv: (Co, Cin)  (Conv1d k=1,
    bias=False).  Returns (B, Co, T), matching AttentionLayer.forward.

    fast_matmul=True (default) runs the two T x T matmuls with bf16 operands and f32
    accumulation (expected small divergence from the f32 reference); fast_matmul=False
    keeps full-f32 MXU math."""
    B, Cin, T = x_nct.shape
    Ck = wq.shape[0]
    Co = wv.shape[0]
    dtype = x_nct.dtype
    itemsize = jnp.dtype(dtype).itemsize
    fast = bool(fast_matmul) and jnp.dtype(dtype) == jnp.float32

    # Pad T to a multiple of 128 when tiling is required; padded keys masked in-kernel.
    if T > 512 and T % 128 != 0:
        t_pad = ((T + 127) // 128) * 128
        x_p = jnp.pad(x_nct, ((0, 0), (0, 0), (0, t_pad - T)))
    else:
        t_pad = T
        x_p = x_nct

    cap = _vmem_capacity_bytes()
    budget = min((cap * 3) // 4, 100 * _MIB)       # headroom for compiler scratch
    tq = _pick_query_tile(t_pad, Ck, Co, itemsize, budget)
    nq = t_pad // tq
    vmem_limit = int(max(32 * _MIB, min(budget, cap - 8 * _MIB)))

    # ---- 1) fused Q/K/V projection (the 1x1 convs), once per (batch, T tile) --------
    w_all = jnp.concatenate([wq, wk, wv], axis=0)  # (2Ck+Co, Cin)
    q_all, k_all, v_all = pl.pallas_call(
        functools.partial(_qkv_proj_kernel, Ck),
        out_shape=(
            jax.ShapeDtypeStruct((B, Ck, t_pad), dtype),   # Q
            jax.ShapeDtypeStruct((B, Ck, t_pad), dtype),   # K
            jax.ShapeDtypeStruct((B, Co, t_pad), dtype),   # V
        ),
        grid_spec=pltpu.PrefetchScalarGridSpec(
            num_scalar_prefetch=0,
            grid=(B, nq),
            in_specs=[
                pl.BlockSpec((None, Cin, tq), lambda b, ti: (b, 0, ti)),
                pl.BlockSpec((2 * Ck + Co, Cin), lambda b, ti: (0, 0)),
            ],
            out_specs=[
                pl.BlockSpec((None, Ck, tq), lambda b, ti: (b, 0, ti)),
                pl.BlockSpec((None, Ck, tq), lambda b, ti: (b, 0, ti)),
                pl.BlockSpec((None, Co, tq), lambda b, ti: (b, 0, ti)),
            ],
        ),
        compiler_params=pltpu.CompilerParams(
            dimension_semantics=("parallel", "parallel"),
            vmem_limit_bytes=vmem_limit,
        ),
    )(x_p, w_all)

    # ---- 2) attention over query tiles ----------------------------------------------
    flops = 2 * B * t_pad * t_pad * (Ck + Co + 8)      # scores + A.V + denom matmul
    transcendentals = B * t_pad * t_pad                # exp
    bytes_accessed = itemsize * B * t_pad * (Ck        # Q (each tile once)
                                             + Ck      # K (once per batch)
                                             + Co      # V (once per batch)
                                             + Co)     # output

    out = pl.pallas_call(
        functools.partial(_attention_kernel, T, fast),
        out_shape=jax.ShapeDtypeStruct((B, Co, t_pad), dtype),
        grid_spec=pltpu.PrefetchScalarGridSpec(
            num_scalar_prefetch=0,
            grid=(B, nq),
            in_specs=[
                pl.BlockSpec((None, Ck, tq), lambda b, qi: (b, 0, qi)),    # Q tile
                pl.BlockSpec((None, Ck, t_pad), lambda b, qi: (b, 0, 0)),  # K, full T
                pl.BlockSpec((None, Co, t_pad), lambda b, qi: (b, 0, 0)),  # V, full T
            ],
            out_specs=pl.BlockSpec((None, Co, tq), lambda b, qi: (b, 0, qi)),
        ),
        compiler_params=pltpu.CompilerParams(
            dimension_semantics=("parallel", "parallel"),
            vmem_limit_bytes=vmem_limit,
        ),
        cost_estimate=pl.CostEstimate(
            flops=flops,
            transcendentals=transcendentals,
            bytes_accessed=bytes_accessed,
        ),
    )(q_all, k_all, v_all)

    if t_pad != T:
        out = out[:, :, :T]
    return out                                        # (B, Co, T)


def reference_attention(x_nct, wq, wk, wv):
    # Pure-JAX reference of the PyTorch forward (for sanity checks).
    Q = jnp.einsum('kc,bct->bkt', wq, x_nct)
    K = jnp.einsum('kc,bct->bkt', wk, x_nct)
    V = jnp.einsum('oc,bct->bot', wv, x_nct)
    A = jax.nn.softmax(jnp.einsum('bkt,bks->bts', Q, K), axis=2)   # (B, T, T)
    y = jnp.einsum('bts,bos->bto', A, V)                           # (B, T, Co)
    return jnp.transpose(y, (0, 2, 1))                             # (B, Co, T)


if __name__ == "__main__":
    # Small shapes consistent with the module.
    B, Cin, T = 2, 8, 16
    key_channels, out_channels = 16, 8

    key = jax.random.PRNGKey(0)
    kx, kq, kk, kv, kx2 = jax.random.split(key, 5)

    x = jax.random.normal(kx, (B, Cin, T), dtype=jnp.float32)
    scale = 1.0 / jnp.sqrt(Cin)                       # Conv1d k=1, bias=False style init
    wq = scale * jax.random.normal(kq, (key_channels, Cin), dtype=jnp.float32)
    wk = scale * jax.random.normal(kk, (key_channels, Cin), dtype=jnp.float32)
    wv = scale * jax.random.normal(kv, (out_channels, Cin), dtype=jnp.float32)

    ref = reference_attention(x, wq, wk, wv)

    # Exact (full-f32 MXU) path: strict check of the module semantics.
    out_exact = jax.block_until_ready(attention_layer(x, wq, wk, wv, fast_matmul=False))
    assert out_exact.shape == (B, out_channels, T), out_exact.shape
    assert jnp.allclose(out_exact, ref, atol=1e-5, rtol=1e-5), "exact path mismatch"

    # Fast (bf16-operand MXU, default) path: expected bf16-level divergence only.
    out_fast = jax.block_until_ready(attention_layer(x, wq, wk, wv))
    assert out_fast.shape == (B, out_channels, T), out_fast.shape
    assert jnp.allclose(out_fast, ref, atol=1e-1, rtol=1e-1), "fast path mismatch"

    # Ragged T > 512: exercises the pad-to-128 + padded-key masking path.
    T2 = 600
    x2 = jax.random.normal(kx2, (1, Cin, T2), dtype=jnp.float32)
    out2 = jax.block_until_ready(attention_layer(x2, wq, wk, wv, fast_matmul=False))
    ref2 = reference_attention(x2, wq, wk, wv)
    assert out2.shape == (1, out_channels, T2), out2.shape
    assert jnp.allclose(out2, ref2, atol=1e-4, rtol=1e-4), "padded path mismatch"

    print("KERNEL_OK")
</pallas_src>

<mosaic_0001>
module attributes {stable_mosaic.version = 11 : i64} {
  func.func @_qkv_proj_kernel(%arg0: i32, %arg1: i32, %arg2: memref<1x8x16xf32, #tpu.memory_space<vmem>>, %arg3: memref<40x8xf32, #tpu.memory_space<vmem>>, %arg4: memref<1x16x16xf32, #tpu.memory_space<vmem>>, %arg5: memref<1x16x16xf32, #tpu.memory_space<vmem>>, %arg6: memref<1x8x16xf32, #tpu.memory_space<vmem>>) attributes {dimension_semantics = [#tpu.dimension_semantics<parallel>, #tpu.dimension_semantics<parallel>], iteration_bounds = array<i64: 2, 1>, scalar_prefetch = 0 : i64, scratch_operands = 0 : i64, tpu.core_type = #tpu.core_type<tc>, window_params = [{transform_indices = @transform_0, window_bounds = array<i64: 1, 8, 16>}, {pipeline_mode = #tpu.pipeline_mode<synchronous>, transform_indices = @transform_1, window_bounds = array<i64: 40, 8>}, {transform_indices = @transform_2, window_bounds = array<i64: 1, 16, 16>}, {transform_indices = @transform_3, window_bounds = array<i64: 1, 16, 16>}, {transform_indices = @transform_4, window_bounds = array<i64: 1, 8, 16>}]} {
    %c0 = arith.constant 0 : index
    %c0_0 = arith.constant 0 : index
    %c0_1 = arith.constant 0 : index
    %0 = vector.load %arg2[%c0, %c0_0, %c0_1] : memref<1x8x16xf32, #tpu.memory_space<vmem>>, vector<1x8x16xf32>
    %1 = vector.shape_cast %0 : vector<1x8x16xf32> to vector<8x16xf32>
    %c0_2 = arith.constant 0 : index
    %c0_3 = arith.constant 0 : index
    %2 = vector.load %arg3[%c0_2, %c0_3] : memref<40x8xf32, #tpu.memory_space<vmem>>, vector<40x8xf32>
    %cst = arith.constant dense<0.000000e+00> : vector<40x16xf32>
    %3 = tpu.matmul %2, %1, %cst {dimension_numbers = #tpu.dot_dimension_numbers<[1], [0], [0], [1], [0, 0, 1, 1], [], []>} : vector<40x8xf32>, vector<8x16xf32>, vector<40x16xf32> -> vector<40x16xf32>
    %4 = vector.extract_strided_slice %3 {offsets = [0, 0], sizes = [16, 16], strides = [1, 1]} : vector<40x16xf32> to vector<16x16xf32>
    %c0_4 = arith.constant 0 : index
    %c0_5 = arith.constant 0 : index
    %c0_6 = arith.constant 0 : index
    %5 = vector.load %arg4[%c0_4, %c0_5, %c0_6] : memref<1x16x16xf32, #tpu.memory_space<vmem>>, vector<1x16x16xf32>
    %6 = vector.shape_cast %5 : vector<1x16x16xf32> to vector<16x16xf32>
    %7 = vector.shape_cast %4 : vector<16x16xf32> to vector<1x16x16xf32>
    tpu.vector_store %arg4[%c0_4, %c0_5, %c0_6], %7 {strides = array<i32>} : memref<1x16x16xf32, #tpu.memory_space<vmem>>, vector<1x16x16xf32>,
    %8 = vector.extract_strided_slice %3 {offsets = [16, 0], sizes = [16, 16], strides = [1, 1]} : vector<40x16xf32> to vector<16x16xf32>
    %c0_7 = arith.constant 0 : index
    %c0_8 = arith.constant 0 : index
    %c0_9 = arith.constant 0 : index
    %9 = vector.load %arg5[%c0_7, %c0_8, %c0_9] : memref<1x16x16xf32, #tpu.memory_space<vmem>>, vector<1x16x16xf32>
    %10 = vector.shape_cast %9 : vector<1x16x16xf32> to vector<16x16xf32>
    %11 = vector.shape_cast %8 : vector<16x16xf32> to vector<1x16x16xf32>
    tpu.vector_store %arg5[%c0_7, %c0_8, %c0_9], %11 {strides = array<i32>} : memref<1x16x16xf32, #tpu.memory_space<vmem>>, vector<1x16x16xf32>,
    %12 = vector.extract_strided_slice %3 {offsets = [32, 0], sizes = [8, 16], strides = [1, 1]} : vector<40x16xf32> to vector<8x16xf32>
    %c0_10 = arith.constant 0 : index
    %c0_11 = arith.constant 0 : index
    %c0_12 = arith.constant 0 : index
    %13 = vector.load %arg6[%c0_10, %c0_11, %c0_12] : memref<1x8x16xf32, #tpu.memory_space<vmem>>, vector<1x8x16xf32>
    %14 = vector.shape_cast %13 : vector<1x8x16xf32> to vector<8x16xf32>
    %15 = vector.shape_cast %12 : vector<8x16xf32> to vector<1x8x16xf32>
    tpu.vector_store %arg6[%c0_10, %c0_11, %c0_12], %15 {strides = array<i32>} : memref<1x8x16xf32, #tpu.memory_space<vmem>>, vector<1x8x16xf32>,
    return
  }
  func.func @transform_0(%arg0: i32, %arg1: i32) -> (i32, i32, i32) {
    %c0_i32 = arith.constant 0 : i32
    %c0_i32_0 = arith.constant 0 : i32
    return %arg0, %c0_i32, %arg1 : i32, i32, i32
  }
  func.func @transform_1(%arg0: i32, %arg1: i32) -> (i32, i32) {
    %c0_i32 = arith.constant 0 : i32
    %c0_i32_0 = arith.constant 0 : i32
    %c0_i32_1 = arith.constant 0 : i32
    return %c0_i32, %c0_i32_0 : i32, i32
  }
  func.func @transform_2(%arg0: i32, %arg1: i32) -> (i32, i32, i32) {
    %c0_i32 = arith.constant 0 : i32
    %c0_i32_0 = arith.constant 0 : i32
    return %arg0, %c0_i32, %arg1 : i32, i32, i32
  }
  func.func @transform_3(%arg0: i32, %arg1: i32) -> (i32, i32, i32) {
    %c0_i32 = arith.constant 0 : i32
    %c0_i32_0 = arith.constant 0 : i32
    return %arg0, %c0_i32, %arg1 : i32, i32, i32
  }
  func.func @transform_4(%arg0: i32, %arg1: i32) -> (i32, i32, i32) {
    %c0_i32 = arith.constant 0 : i32
    %c0_i32_0 = arith.constant 0 : i32
    return %arg0, %c0_i32, %arg1 : i32, i32, i32
  }
}

</mosaic_0001>

<llo_original>
// kernel: tpu_custom_call.1
$region0: #{tpu_custom_call.1}
  #allocation0 [shape = 'u32[]', space=smem, size = 0x4, offset = 0x4, fixed_abs, tag = 'smem constant byte address 0x4 - core index']
  #allocation1 [shape = 'u32[144,128]{1,0:T(1,128)}', space=vmem, size = 0x12000, scoped, tag = 'internal scratch']
  %s0 = inlined_call_operand.vmem [shape: f32[2,8,16], index: 0, kind: input, shape index: {}]
  %s1 = inlined_call_operand.vmem [shape: f32[40,8], index: 1, kind: input, shape index: {}]
  %s2 = inlined_call_operand.hbm [shape: f32[2,16,16], index: 2, kind: output, shape index: {0}]
  %s3 = inlined_call_operand.hbm [shape: f32[2,16,16], index: 3, kind: output, shape index: {1}]
  %s4 = inlined_call_operand.hbm [shape: f32[2,8,16], index: 4, kind: output, shape index: {2}]
  %5 = xla_tuple %s2, %s3, %s4
  %s6 = sld [smem:[#allocation0]]
  $region57: #{tpu_custom_call.1} parent=0
    _
  %s8 = ssub.s32 1, %s6
  %s9 = scalar_select 0, %s8, %s6
  $region1: #{tpu_custom_call.1} parent=0
    #allocation2 [shape = 'u8[16384]{0}', space=vmem, size = 0x4000, scoped, tag = 'output window, operand 0']
    #allocation3 [shape = 's32[2]{0}', space=sflag, size = 0x8, scoped, tag = 'scoped memory for tpu_custom_call.1']
    #allocation4 [shape = 'u8[16384]{0}', space=vmem, size = 0x4000, scoped, tag = 'output window, operand 1']
    #allocation5 [shape = 's32[2]{0}', space=sflag, size = 0x8, scoped, tag = 'scoped memory for tpu_custom_call.1']
    #allocation6 [shape = 'u8[8192]{0}', space=vmem, size = 0x2000, scoped, tag = 'output window, operand 2']
    %10 = vsyncpa [#allocation3], 0
    %s11 = scalar_lea.sflag [#allocation3], 1
    %12 = vsyncpa %s11, 0
    %13 = vsyncpa [#allocation5], 0
    %s14 = scalar_lea.sflag [#allocation5], 1
    %15 = vsyncpa %s14, 0
    loop: start=0, step=1, limit=4
    $region2: #{tpu_custom_call.1} parent=1 // loop_pre_header
      _
    $region3: #{tpu_custom_call.1} parent=1 // loop_header
      %s17 = sphi 0, %s21
      %p18 = scmp.ge.s32.totalorder %s17, 4
      %s24 = sphi 0, %s36
      %s25 = sphi 0, %s32
      %s26 = sphi 0, %s24
      %s27 = sphi 0, %s25
      %s28 = sphi 0, %s26
      %s29 = sphi 0, %s27
      %s41 = sphi 0, %s43
      %s44 = sphi 0, %s41
      %s45 = sphi 0, %s44
      %s61 = sphi 0, %s45
      %s65 = sphi 0, %s65
      %s67 = sphi 0, %s65
      %s68 = sphi 0, %s67
      %s82 = sphi 0, %s68
      %s90 = sphi 0, %s92
      %s93 = sphi 0, %s90
      %s94 = sphi 0, %s93
      %s110 = sphi 0, %s94
      %s118 = sphi 0, %s120
      %s121 = sphi 0, %s118
      %s122 = sphi 0, %s121
      %s138 = sphi 0, %s122
      %s146 = sphi 0, %s148
      %s149 = sphi 0, %s146
      %s150 = sphi 0, %s149
      %s166 = sphi 0, %s150
    $region4: #{tpu_custom_call.1} parent=1 // loop_header_branch
      %20 = sbr.rel (%p18) target = $region8
    $region5: #{tpu_custom_call.1} parent=1 // loop_body
      %s22 = ssub.s32 %s17, 1
      %s23 = ssub.s32 %s17, 2
      %s30 = sadd.s32 1, %s25
      %p31 = scmp.ge.s32.totalorder %s30, 1
      %s32 = scalar_select %p31, 0, %s30
      %s33 = sadd.s32 1, %s24
      %s34 = scalar_select %p31, %s33, %s24
      %p35 = scmp.ge.s32.totalorder %s34, 2
      %s36 = scalar_select %p35, 0, %s34
      %s37 = ssub.s32 %s24, %s36
      %s38 = ssub.s32 %s25, %s32
      %s39 = sor.u32 %s37, %s38
      %p40 = scmp.eq.s32.totalorder %s39, 0
      %s42 = sadd.s32 %s41, 1
      %s43 = scalar_select %p40, %s41, %s42
      %p46 = pneg %p40
      %p47 = scmp.eq.s32.totalorder %s17, 1
      %p48 = por %p46, %p47
      %p49 = scmp.ne.s32.totalorder %s41, %s44
      %p50 = scmp.eq.s32.totalorder %s17, 0
      %p51 = por %p49, %p50
      %p52 = scmp.ne.s32.totalorder %s41, %s44
      %p53 = scmp.eq.s32.totalorder %s22, 1
      %p54 = por %p52, %p53
      %p55 = scmp.ne.s32.totalorder %s44, %s45
      %p56 = scmp.eq.s32.totalorder %s22, 0
      %p57 = por %p55, %p56
      %p58 = scmp.ne.s32.totalorder %s44, %s45
      %p59 = scmp.eq.s32.totalorder %s23, 1
      %p60 = por %p58, %p59
      %p62 = scmp.ne.s32.totalorder %s45, %s61
      %p63 = scmp.eq.s32.totalorder %s23, 0
      %p64 = por %p62, %p63
      %s66 = sadd.s32 %s65, 1
      %p69 = scmp.eq.s32.totalorder %s17, 1
      %p70 = scmp.ne.s32.totalorder %s65, %s67
      %p71 = scmp.eq.s32.totalorder %s17, 0
      %p72 = por %p70, %p71
      %p73 = scmp.ne.s32.totalorder %s65, %s67
      %p74 = scmp.eq.s32.totalorder %s22, 1
      %p75 = por %p73, %p74
      %p76 = scmp.ne.s32.totalorder %s67, %s68
      %p77 = scmp.eq.s32.totalorder %s22, 0
      %p78 = por %p76, %p77
      %p79 = scmp.ne.s32.totalorder %s67, %s68
      %p80 = scmp.eq.s32.totalorder %s23, 1
      %p81 = por %p79, %p80
      %p83 = scmp.ne.s32.totalorder %s68, %s82
      %p84 = scmp.eq.s32.totalorder %s23, 0
      %p85 = por %p83, %p84
      %s86 = ssub.s32 %s24, %s36
      %s87 = ssub.s32 %s25, %s32
      %s88 = sor.u32 %s86, %s87
      %p89 = scmp.eq.s32.totalorder %s88, 0
      %s91 = sadd.s32 %s90, 1
      %s92 = scalar_select %p89, %s90, %s91
      %p95 = pneg %p89
      %p96 = scmp.eq.s32.totalorder %s17, 1
      %p97 = por %p95, %p96
      %p98 = scmp.ne.s32.totalorder %s90, %s93
      %p99 = scmp.eq.s32.totalorder %s17, 0
      %p100 = por %p98, %p99
      %p101 = scmp.ne.s32.totalorder %s90, %s93
      %p102 = scmp.eq.s32.totalorder %s22, 1
      %p103 = por %p101, %p102
      %p104 = scmp.ne.s32.totalorder %s93, %s94
      %p105 = scmp.eq.s32.totalorder %s22, 0
      %p106 = por %p104, %p105
      %p107 = scmp.ne.s32.totalorder %s93, %s94
      %p108 = scmp.eq.s32.totalorder %s23, 1
      %p109 = por %p107, %p108
      %p111 = scmp.ne.s32.totalorder %s94, %s110
      %p112 = scmp.eq.s32.totalorder %s23, 0
      %p113 = por %p111, %p112
      %s114 = ssub.s32 %s24, %s36
      %s115 = ssub.s32 %s25, %s32
      %s116 = sor.u32 %s114, %s115
      %p117 = scmp.eq.s32.totalorder %s116, 0
      %s119 = sadd.s32 %s118, 1
      %s120 = scalar_select %p117, %s118, %s119
      %p123 = pneg %p117
      %p124 = scmp.eq.s32.totalorder %s17, 1
      %p125 = por %p123, %p124
      %p126 = scmp.ne.s32.totalorder %s118, %s121
      %p127 = scmp.eq.s32.totalorder %s17, 0
      %p128 = por %p126, %p127
      %p129 = scmp.ne.s32.totalorder %s118, %s121
      %p130 = scmp.eq.s32.totalorder %s22, 1
      %p131 = por %p129, %p130
      %p132 = scmp.ne.s32.totalorder %s121, %s122
      %p133 = scmp.eq.s32.totalorder %s22, 0
      %p134 = por %p132, %p133
      %p135 = scmp.ne.s32.totalorder %s121, %s122
      %p136 = scmp.eq.s32.totalorder %s23, 1
      %p137 = por %p135, %p136
      %p139 = scmp.ne.s32.totalorder %s122, %s138
      %p140 = scmp.eq.s32.totalorder %s23, 0
      %p141 = por %p139, %p140
      %s142 = ssub.s32 %s24, %s36
      %s143 = ssub.s32 %s25, %s32
      %s144 = sor.u32 %s142, %s143
      %p145 = scmp.eq.s32.totalorder %s144, 0
      %s147 = sadd.s32 %s146, 1
      %s148 = scalar_select %p145, %s146, %s147
      %p151 = pneg %p145
      %p152 = scmp.eq.s32.totalorder %s17, 1
      %p153 = por %p151, %p152
      %p154 = scmp.ne.s32.totalorder %s146, %s149
      %p155 = scmp.eq.s32.totalorder %s17, 0
      %p156 = por %p154, %p155
      %p157 = scmp.ne.s32.totalorder %s146, %s149
      %p158 = scmp.eq.s32.totalorder %s22, 1
      %p159 = por %p157, %p158
      %p160 = scmp.ne.s32.totalorder %s149, %s150
      %p161 = scmp.eq.s32.totalorder %s22, 0
      %p162 = por %p160, %p161
      %p163 = scmp.ne.s32.totalorder %s149, %s150
      %p164 = scmp.eq.s32.totalorder %s23, 1
      %p165 = por %p163, %p164
      %p167 = scmp.ne.s32.totalorder %s150, %s166
      %p168 = scmp.eq.s32.totalorder %s23, 0
      %p169 = por %p167, %p168
      %p170 = scmp.le.s32.totalorder 1, %s17
      %p171 = scmp.lt.s32.totalorder %s17, 3
      %p172 = pnand %p170, %p171
      %p173 = pneg %p172
      // Predicated region
      $region9: #{tpu_custom_call.1} parent=5 // pred_check
        _
      $region10: #{tpu_custom_call.1} parent=5 // pred_check_branch
        %175 = sbr.rel (%p172) target = $region12
      $region11: #{tpu_custom_call.1} parent=5 // pred_region
        %s176 = ssub.s32 %s17, 1
        // Predicated region
        $region13: #{tpu_custom_call.1} parent=11 // pred_check
          %p177 = pneg %p78
        $region14: #{tpu_custom_call.1} parent=11 // pred_check_branch
          %179 = sbr.rel (%p177) target = $region16
        $region15: #{tpu_custom_call.1} parent=11 // pred_region
          _
        $region16: #{tpu_custom_call.1} parent=11 // pred_fallthru
          _
      $region12: #{tpu_custom_call.1} parent=5 // pred_fallthru
        _
      %p180 = scmp.lt.s32.totalorder %s17, 2
      // Predicated region
      $region17: #{tpu_custom_call.1} parent=5 // pred_check
        %p181 = pneg %p180
      $region18: #{tpu_custom_call.1} parent=5 // pred_check_branch
        %183 = sbr.rel (%p181) target = $region20
      $region19: #{tpu_custom_call.1} parent=5 // pred_region
        // Predicated region
        $region21: #{tpu_custom_call.1} parent=19 // pred_check
          %p184 = pneg %p51
        $region22: #{tpu_custom_call.1} parent=19 // pred_check_branch
          %186 = sbr.rel (%p184) target = $region24
        $region23: #{tpu_custom_call.1} parent=19 // pred_region
          %p187 = scmp.lt.s32.totalorder %s24, 1
          %s188 = scalar_select %p187, %s24, 1
          %p189 = scmp.lt.s32.totalorder %s25, 0
          %s190 = scalar_select %p189, %s25, 0
          %s191 = sadd.s32 %s190, %s188
          %s192 = smul.addr %s191, 8
          %s193 = scalar_lea.vmem %s0, %s192
        $region24: #{tpu_custom_call.1} parent=19 // pred_fallthru
          _
      $region20: #{tpu_custom_call.1} parent=5 // pred_fallthru
        _
      %p194 = scmp.le.s32.totalorder 1, %s17
      %p195 = scmp.lt.s32.totalorder %s17, 3
      %p196 = pnand %p194, %p195
      %p197 = pneg %p196
      // Predicated region
      $region25: #{tpu_custom_call.1} parent=5 // pred_check
        _
      $region26: #{tpu_custom_call.1} parent=5 // pred_check_branch
        %199 = sbr.rel (%p196) target = $region28
      $region27: #{tpu_custom_call.1} parent=5 // pred_region
        %s200 = ssub.s32 %s17, 1
        %p201 = scmp.lt.s32.totalorder %s26, 1
        %s202 = scalar_select %p201, %s26, 1
        %p203 = scmp.lt.s32.totalorder %s27, 0
        %s204 = scalar_select %p203, %s27, 0
        %s205 = sadd.s32 %s204, %s202
        %s206 = smul.addr %s205, 8
        %s207 = scalar_lea.vmem %s0, %s206
        %p208 = pneg %p57
        %p209 = pneg %p54
        %p210 = pneg %p78
        %p211 = pneg %p75
        %p212 = pneg %p106
        %p213 = pneg %p103
        %s214 = sand.u32 %s93, 1
        %s215 = scalar_lea.sflag [#allocation3], %s214
        %s216 = sand.u32 %s93, 1
        %s217 = smul.addr %s216, 16
        %s218 = scalar_lea.vmem [#allocation2], %s217
        %p219 = pneg %p134
        %p220 = pneg %p131
        %s221 = sand.u32 %s22, 1
        %s222 = scalar_lea.sflag [#allocation5], %s221
        %s223 = sand.u32 %s121, 1
        %s224 = smul.addr %s223, 16
        %s225 = scalar_lea.vmem [#allocation4], %s224
        %p226 = pneg %p162
        %p227 = pneg %p159
        %s228 = sand.u32 %s22, 1
        %s229 = scalar_lea.sflag [#allocation5], %s228
        %s230 = sand.u32 %s149, 1
        %s231 = smul.addr %s230, 8
        %s232 = scalar_lea.vmem [#allocation6], %s231
        %p233 = scmp.lt.s32.totalorder %s26, 1
        %s234 = scalar_select %p233, %s26, 1
        %p235 = scmp.lt.s32.totalorder %s27, 0
        %s236 = scalar_select %p235, %s27, 0
        %s237 = sadd.s32 %s236, %s234
        %s238 = smul.addr %s237, 8
        %s239 = scalar_lea.vmem %s0, %s238
        %v240 = vld [vmem:[%s239] sm:$0xff]
        %v241 = vld [vmem:[%s1] sm:$0xff]
        %v242 = vld [vmem:[%s1 + $0x8] sm:$0xff]
        %v243 = vld [vmem:[%s1 + $0x10] sm:$0xff]
        %v244 = vld [vmem:[%s1 + $0x18] sm:$0xff]
        %v245 = vld [vmem:[%s1 + $0x20] sm:$0xff]
        %vm246 = vcmask 64512
        %v248 = vsel %vm246, %v241, 0
        %v251 = vsel %vm246, %v242, 0
        %v254 = vsel %vm246, %v243, 0
        %v257 = vsel %vm246, %v244, 0
        %v260 = vsel %vm246, %v245, 0
        %262 = vmatprep.subr.mxu0 0.0
        %263 = vmatpush1.msra.mxu0 0.0
        %264 = vmatprep.subr.mxu0 0.0
        %265 = vmatpush1.msra.mxu0 0.0
        %266 = vmatprep.subr.mxu0 0.0
        %267 = vmatpush1.msra.mxu0 0.0
        %268 = vmatprep.subr.mxu0 0.0
        %269 = vmatpush1.msra.mxu0 0.0
        %270 = vmatprep.subr.mxu0 0.0
        %271 = vmatpush1.msra.mxu0 0.0
        %272 = vmatprep.subr.mxu0 0.0
        %273 = vmatpush1.msra.mxu0 0.0
        %274 = vmatprep.subr.mxu0 0.0
        %275 = vmatpush1.msra.mxu0 0.0
        %276 = vmatprep.subr.mxu0 0.0
        %277 = vmatpush1.msra.mxu0 0.0
        %278 = vmatprep.subr.mxu0 0.0
        %279 = vmatpush1.msra.mxu0 0.0
        %280 = vmatprep.subr.mxu0 0.0
        %281 = vmatpush1.msra.mxu0 0.0
        %282 = vmatprep.subr.mxu0 0.0
        %283 = vmatpush1.msra.mxu0 0.0
        %284 = vmatprep.subr.mxu0 0.0
        %285 = vmatpush1.msra.mxu0 0.0
        %286 = vmatprep.subr.mxu0 0.0
        %287 = vmatpush1.msra.mxu0 0.0
        %288 = vmatprep.subr.mxu0 0.0
        %289 = vmatpush1.msra.mxu0 0.0
        %290 = vmatprep.subr.mxu0 0.0
        %291 = vmatpush1.msra.mxu0 0.0
        %292 = vmatprep.subr.mxu0 0.0
        %293 = vmatpush1.msra.mxu0 %v240
        %294 = vmatprep.subr.mxu0 0.0
        %295 = vmatpush2.msra.mxu0 0.0
        %296 = vmatprep.subr.mxu0 0.0
        %297 = vmatpush2.msra.mxu0 0.0
        %298 = vmatprep.subr.mxu0 0.0
        %299 = vmatpush2.msra.mxu0 0.0
        %300 = vmatprep.subr.mxu0 0.0
        %301 = vmatpush2.msra.mxu0 0.0
        %302 = vmatprep.subr.mxu0 0.0
        %303 = vmatpush2.msra.mxu0 0.0
        %304 = vmatprep.subr.mxu0 0.0
        %305 = vmatpush2.msra.mxu0 0.0
        %306 = vmatprep.subr.mxu0 0.0
        %307 = vmatpush2.msra.mxu0 0.0
        %308 = vmatprep.subr.mxu0 0.0
        %309 = vmatpush2.msra.mxu0 0.0
        %310 = vmatprep.subr.mxu0 0.0
        %311 = vmatpush2.msra.mxu0 0.0
        %312 = vmatprep.subr.mxu0 0.0
        %313 = vmatpush2.msra.mxu0 0.0
        %314 = vmatprep.subr.mxu0 0.0
        %315 = vmatpush2.msra.mxu0 0.0
        %316 = vmatprep.subr.mxu0 0.0
        %317 = vmatpush2.msra.mxu0 0.0
        %318 = vmatprep.subr.mxu0 0.0
        %319 = vmatpush2.msra.mxu0 0.0
        %320 = vmatprep.subr.mxu0 0.0
        %321 = vmatpush2.msra.mxu0 0.0
        %322 = vmatprep.subr.mxu0 0.0
        %323 = vmatpush2.msra.mxu0 0.0
        %324 = vmatprep.subr.mxu0 0.0
        %325 = vmatpush2.msra.mxu0 0.0
        %326 = vmatprep.mubr.f32.mxu0 0.0
        %327 = vmatmul.mubr.f32.gmra.mxu0 %v248
        %v328 = vpop.f32.mrf.mxu0
        %v329 = vadd.f32 0.0, %v328
        %v330 = vpop.f32.mrf.mxu0
        %331 = vmatprep.mubr.f32.mxu0 0.0
        %332 = vmatmul.mubr.f32.gmra.mxu0 %v251
        %v333 = vpop.f32.mrf.mxu0
        %v334 = vadd.f32 0.0, %v333
        %v335 = vpop.f32.mrf.mxu0
        %336 = vmatprep.mubr.f32.mxu0 0.0
        %337 = vmatmul.mubr.f32.gmra.mxu0 %v254
        %v338 = vpop.f32.mrf.mxu0
        %v339 = vadd.f32 0.0, %v338
        %v340 = vpop.f32.mrf.mxu0
        %341 = vmatprep.mubr.f32.mxu0 0.0
        %342 = vmatmul.mubr.f32.gmra.mxu0 %v257
        %v343 = vpop.f32.mrf.mxu0
        %v344 = vadd.f32 0.0, %v343
        %v345 = vpop.f32.mrf.mxu0
        %346 = vmatprep.mubr.f32.mxu0 0.0
        %347 = vmatmul.mubr.f32.gmra.mxu0 %v260
        %v348 = vpop.f32.mrf.mxu0
        %v349 = vadd.f32 0.0, %v348
        %v350 = vpop.f32.mrf.mxu0
        %351 = vdwg.mxu0
        %vm352 = vcmask 130048
        %353 = vst.msk [vmem:[%s218] sm:$0xff] %vm352, %v329
        %354 = vst.msk [vmem:[%s218 + $0x8] sm:$0xff] %vm352, %v334
        %355 = vst.msk [vmem:[%s225] sm:$0xff] %vm352, %v339
        %356 = vst.msk [vmem:[%s225 + $0x8] sm:$0xff] %vm352, %v344
        %357 = vst.msk [vmem:[%s232] sm:$0xff] %vm352, %v349
        %s358 = sand.u32 %s93, 1
        %s359 = scalar_lea.sflag [#allocation3], %s358
        %s360 = sand.u32 %s93, 1
        %s361 = smul.addr %s360, 16
        %s362 = scalar_lea.vmem [#allocation2], %s361
        %s363 = sand.u32 %s22, 1
        %s364 = scalar_lea.sflag [#allocation5], %s363
        %s365 = sand.u32 %s121, 1
        %s366 = smul.addr %s365, 16
        %s367 = scalar_lea.vmem [#allocation4], %s366
        %s368 = sand.u32 %s22, 1
        %s369 = scalar_lea.sflag [#allocation5], %s368
        %s370 = sand.u32 %s149, 1
        %s371 = smul.addr %s370, 8
        %s372 = scalar_lea.vmem [#allocation6], %s371
        // Predicated region
        $region29: #{tpu_custom_call.1} parent=27 // pred_check
          %p373 = pneg %p103
        $region30: #{tpu_custom_call.1} parent=27 // pred_check_branch
          %375 = sbr.rel (%p373) target = $region32
        $region31: #{tpu_custom_call.1} parent=27 // pred_region
          %s377 = ssub.s32 256, 256
          %378 = vsyncadd %s359, %s377
          %s379 = smul.addr %s26, 2
          %s380 = sadd.s32 %s27, %s379
          %s381 = smul.addr %s380, 128
          %s382 = scalar_lea.hbm %s2, %s381
          %s383 = sshll.u32 %s362, 4
          %s384 = int_to_ptr.vmem [resolvable:$true] %s383
          %389 = dma.vmem_to_hbm [thread:$0]  %s384, 256, %s382, %s359, 128, 128, 8
        $region32: #{tpu_custom_call.1} parent=27 // pred_fallthru
          _
        // Predicated region
        $region33: #{tpu_custom_call.1} parent=27 // pred_check
          %p390 = pneg %p131
        $region34: #{tpu_custom_call.1} parent=27 // pred_check_branch
          %392 = sbr.rel (%p390) target = $region36
        $region35: #{tpu_custom_call.1} parent=27 // pred_region
          %s394 = ssub.s32 256, 256
          %395 = vsyncadd %s364, %s394
          %s396 = smul.addr %s26, 2
          %s397 = sadd.s32 %s27, %s396
          %s398 = smul.addr %s397, 128
          %s399 = scalar_lea.hbm %s3, %s398
          %s400 = sshll.u32 %s367, 4
          %s401 = int_to_ptr.vmem [resolvable:$true] %s400
          %406 = dma.vmem_to_hbm [thread:$0]  %s401, 256, %s399, %s364, 128, 128, 8
        $region36: #{tpu_custom_call.1} parent=27 // pred_fallthru
          _
        // Predicated region
        $region37: #{tpu_custom_call.1} parent=27 // pred_check
          %p407 = pneg %p159
        $region38: #{tpu_custom_call.1} parent=27 // pred_check_branch
          %409 = sbr.rel (%p407) target = $region40
        $region39: #{tpu_custom_call.1} parent=27 // pred_region
          %s411 = ssub.s32 128, 128
          %412 = vsyncadd %s369, %s411
          %s413 = sadd.s32 %s27, %s26
          %s414 = smul.addr %s413, 128
          %s415 = scalar_lea.hbm %s4, %s414
          %s417 = sshll.u32 %s372, 4
          %s418 = int_to_ptr.vmem [resolvable:$true] %s417
          %420 = dma.vmem_to_hbm [thread:$0]  %s418, 128, %s415, %s369
        $region40: #{tpu_custom_call.1} parent=27 // pred_fallthru
          _
      $region28: #{tpu_custom_call.1} parent=5 // pred_fallthru
        _
      %p421 = scmp.le.s32.totalorder 2, %s17
      // Predicated region
      $region41: #{tpu_custom_call.1} parent=5 // pred_check
        %p422 = pneg %p421
      $region42: #{tpu_custom_call.1} parent=5 // pred_check_branch
        %424 = sbr.rel (%p422) target = $region44
      $region43: #{tpu_custom_call.1} parent=5 // pred_region
        %s425 = ssub.s32 %s17, 2
        // Predicated region
        $region45: #{tpu_custom_call.1} parent=43 // pred_check
          %p426 = pneg %p109
        $region46: #{tpu_custom_call.1} parent=43 // pred_check_branch
          %428 = sbr.rel (%p426) target = $region48
        $region47: #{tpu_custom_call.1} parent=43 // pred_region
          %s429 = sand.u32 %s94, 1
          %s430 = scalar_lea.sflag [#allocation3], %s429
          %s431 = sand.u32 %s94, 1
          %s432 = smul.addr %s431, 16
          %s433 = scalar_lea.vmem [#allocation2], %s432
          %434 = dma.done %s430, 256
        $region48: #{tpu_custom_call.1} parent=43 // pred_fallthru
          _
        // Predicated region
        $region49: #{tpu_custom_call.1} parent=43 // pred_check
          %p435 = pneg %p137
        $region50: #{tpu_custom_call.1} parent=43 // pred_check_branch
          %437 = sbr.rel (%p435) target = $region52
        $region51: #{tpu_custom_call.1} parent=43 // pred_region
          %s438 = sand.u32 %s23, 1
          %s439 = scalar_lea.sflag [#allocation5], %s438
          %s440 = sand.u32 %s122, 1
          %s441 = smul.addr %s440, 16
          %s442 = scalar_lea.vmem [#allocation4], %s441
          %443 = dma.done %s439, 256
        $region52: #{tpu_custom_call.1} parent=43 // pred_fallthru
          _
        // Predicated region
        $region53: #{tpu_custom_call.1} parent=43 // pred_check
          %p444 = pneg %p165
        $region54: #{tpu_custom_call.1} parent=43 // pred_check_branch
          %446 = sbr.rel (%p444) target = $region56
        $region55: #{tpu_custom_call.1} parent=43 // pred_region
          %s447 = sand.u32 %s23, 1
          %s448 = scalar_lea.sflag [#allocation5], %s447
          %s449 = sand.u32 %s150, 1
          %s450 = smul.addr %s449, 8
          %s451 = scalar_lea.vmem [#allocation6], %s450
          %452 = dma.done %s448, 128
        $region56: #{tpu_custom_call.1} parent=43 // pred_fallthru
          _
      $region44: #{tpu_custom_call.1} parent=5 // pred_fallthru
        _
    $region6: #{tpu_custom_call.1} parent=1 // loop_footer
      %s21 = sadd.s32 1, %s17
    $region7: #{tpu_custom_call.1} parent=1 // loop_footer_branch
      %16 = sbr.rel target = $region3
    $region8: #{tpu_custom_call.1} parent=1 // loop_exit
      _
    %453 = vsyncpa [#allocation3], 1
    %s454 = scalar_lea.sflag [#allocation3], 1
    %455 = vsyncpa %s454, 1
    %456 = vsyncpa [#allocation5], 1
    %s457 = scalar_lea.sflag [#allocation5], 1
    %458 = vsyncpa %s457, 1

</llo_original>
